<compile_context>
chip_gen: v7x
topology: tpu7x:2x2x1
jax: 0.10.0
libtpu: 0.0.40
codegen_flags: <defaults>
</compile_context>

<pallas_src>
import math
import functools

import jax
import jax.numpy as jnp
from jax.experimental import pallas as pl
from jax.experimental.pallas import tpu as pltpu


def make_pe_table(max_len: int, d_model: int) -> jnp.ndarray:
    """Deterministic sin/cos positional-encoding buffer, identical to the
    PyTorch __init__ math (d_model assumed even, as in the reference)."""
    position = jnp.arange(max_len, dtype=jnp.float32)[:, None]            # (max_len, 1)
    div_term = jnp.exp(
        jnp.arange(0, d_model, 2, dtype=jnp.float32) * (-math.log(10000.0) / d_model)
    )                                                                      # (d_model/2,)
    angles = position * div_term                                           # (max_len, d_model/2)
    pe = jnp.zeros((max_len, d_model), dtype=jnp.float32)
    pe = pe.at[:, 0::2].set(jnp.sin(angles))
    pe = pe.at[:, 1::2].set(jnp.cos(angles))
    return pe


def _pos_enc_kernel(seed_ref, x_ref, pe_ref, o_ref, *,
                    dropout_p: float, block_rows: int, block_cols: int,
                    total_cols: int):
    # x_ref: (BT, TC) tile of the lane-dense (B, S*D) view.
    # pe_ref: (1, TC) tile of the (1, S*D) positional table -> sublane broadcast.
    y = x_ref[...] + pe_ref[...]

    if dropout_p > 0.0:
        # Inverted dropout: zero with prob p, scale kept values by 1/(1-p).
        # Mask comes from a stateless per-element hash (lowbias32) of the
        # global (row, col) index mixed with the seed, so it is deterministic
        # and tiling-independent.
        c = pl.program_id(0)   # column tile (outer grid axis)
        r = pl.program_id(1)   # row tile    (inner grid axis)
        row0 = (r * block_rows).astype(jnp.uint32)
        col0 = (c * block_cols).astype(jnp.uint32)
        rows = jax.lax.broadcasted_iota(jnp.uint32, y.shape, 0) + row0
        cols = jax.lax.broadcasted_iota(jnp.uint32, y.shape, 1) + col0
        idx = rows * jnp.uint32(total_cols) + cols

        h = idx ^ seed_ref[0].astype(jnp.uint32)
        h = (h ^ (h >> jnp.uint32(16))) * jnp.uint32(0x7FEB352D)
        h = (h ^ (h >> jnp.uint32(15))) * jnp.uint32(0x846CA68B)
        h = h ^ (h >> jnp.uint32(16))

        threshold = jnp.uint32(min(int(dropout_p * 4294967296.0), 4294967295))
        keep = h >= threshold
        scale = 1.0 / (1.0 - dropout_p)
        y = jnp.where(keep, y * scale, jnp.zeros_like(y))

    o_ref[...] = y.astype(o_ref.dtype)


def positional_encoder(x: jnp.ndarray,
                       pe: jnp.ndarray,
                       *,
                       dropout_p: float = 0.1,
                       training: bool = True,
                       seed: int = 0) -> jnp.ndarray:
    """Forward pass of PositionalEncoder: dropout(x + pe[:x.shape[1]])."""
    B, S, D = x.shape
    assert pe.shape[1] == D and pe.shape[0] >= S
    SD = S * D

    p = float(dropout_p) if training else 0.0
    if p >= 1.0:
        # Degenerate torch behaviour: everything dropped.
        return jnp.zeros_like(x)

    # Lane-dense views (trace-time reshape glue, no data movement in-kernel).
    x2 = x.reshape(B, SD)
    pe2 = pe[:S].astype(x.dtype).reshape(1, SD)

    # Block sizing: ~2 MiB f32 blocks; last dim a multiple of 128 (or full),
    # second-to-last a multiple of 8 (or full).  Safe on v5e/v6e/v7x VMEM.
    MAX_COLS = 4096
    MAX_ROWS = 128
    TC = SD if SD <= MAX_COLS else MAX_COLS
    BT = B if B <= MAX_ROWS else MAX_ROWS
    n_c = (SD + TC - 1) // TC
    n_r = (B + BT - 1) // BT

    kernel = functools.partial(_pos_enc_kernel, dropout_p=p,
                               block_rows=BT, block_cols=TC, total_cols=SD)
    seed_arr = jnp.array([seed], dtype=jnp.int32)

    grid_spec = pltpu.PrefetchScalarGridSpec(
        num_scalar_prefetch=1,
        # Column tiles outermost so the pe block stays resident across the
        # inner batch-row axis (no re-DMA of the constant row).
        grid=(n_c, n_r),
        in_specs=[
            pl.BlockSpec((BT, TC), lambda c, r, seed_ref: (r, c)),   # x
            pl.BlockSpec((1, TC), lambda c, r, seed_ref: (0, c)),    # pe row
        ],
        out_specs=pl.BlockSpec((BT, TC), lambda c, r, seed_ref: (r, c)),
    )

    out2 = pl.pallas_call(
        kernel,
        out_shape=jax.ShapeDtypeStruct((B, SD), x.dtype),
        grid_spec=grid_spec,
        compiler_params=pltpu.CompilerParams(
            dimension_semantics=("parallel", "parallel"),
            vmem_limit_bytes=32 * 1024 * 1024),
    )(seed_arr, x2, pe2)

    return out2.reshape(B, S, D)


if __name__ == "__main__":
    # Small shapes consistent with the module: (batch, seq, d_model)
    B, S, D = 2, 8, 32
    MAX_LEN = 64

    key = jax.random.PRNGKey(0)
    x = jax.random.normal(key, (B, S, D), dtype=jnp.float32)

    pe = make_pe_table(MAX_LEN, D)

    # 1) Eval-mode (dropout = identity): check exactly against plain-JAX reference.
    y_eval = positional_encoder(x, pe, dropout_p=0.1, training=False)
    y_eval = jax.block_until_ready(y_eval)
    y_ref = x + pe[:S][None, :, :]
    assert y_eval.shape == (B, S, D)
    assert jnp.allclose(y_eval, y_ref, atol=1e-6, rtol=1e-6), "eval-mode mismatch"

    # 2) Training-mode dropout path (in-kernel hash mask + 1/(1-p) scaling).
    y_train = positional_encoder(x, pe, dropout_p=0.1, training=True, seed=123)
    y_train = jax.block_until_ready(y_train)
    # Every surviving element equals the eval output scaled by 1/(1-p); dropped are 0.
    scaled = y_ref / (1.0 - 0.1)
    ok = jnp.logical_or(jnp.isclose(y_train, 0.0, atol=1e-6),
                        jnp.isclose(y_train, scaled, atol=1e-5, rtol=1e-5))
    assert bool(jnp.all(ok)), "train-mode dropout semantics mismatch"

    print("KERNEL_OK")
</pallas_src>

<mosaic_0001>
module attributes {stable_mosaic.version = 11 : i64} {
  func.func @_pos_enc_kernel(%arg0: i32, %arg1: i32, %arg2: memref<1xi32, #tpu.memory_space<smem>>, %arg3: memref<2x256xf32, #tpu.memory_space<vmem>>, %arg4: memref<1x256xf32, #tpu.memory_space<vmem>>, %arg5: memref<2x256xf32, #tpu.memory_space<vmem>>) attributes {dimension_semantics = [#tpu.dimension_semantics<parallel>, #tpu.dimension_semantics<parallel>], iteration_bounds = array<i64: 1, 1>, scalar_prefetch = 1 : i64, scratch_operands = 0 : i64, tpu.core_type = #tpu.core_type<tc>, window_params = [{transform_indices = @transform_0, window_bounds = array<i64: 2, 256>}, {transform_indices = @transform_1, window_bounds = array<i64: 1, 256>}, {transform_indices = @transform_2, window_bounds = array<i64: 2, 256>}]} {
    %c0 = arith.constant 0 : index
    %c0_0 = arith.constant 0 : index
    %0 = vector.load %arg3[%c0, %c0_0] : memref<2x256xf32, #tpu.memory_space<vmem>>, vector<2x256xf32>
    %c0_1 = arith.constant 0 : index
    %c0_2 = arith.constant 0 : index
    %1 = vector.load %arg4[%c0_1, %c0_2] : memref<1x256xf32, #tpu.memory_space<vmem>>, vector<1x256xf32>
    %2 = vector.broadcast %1 : vector<1x256xf32> to vector<2x256xf32>
    %3 = arith.addf %0, %2 : vector<2x256xf32>
    %c0_3 = arith.constant 0 : index
    %c0_4 = arith.constant 0 : index
    %4 = vector.load %arg5[%c0_3, %c0_4] : memref<2x256xf32, #tpu.memory_space<vmem>>, vector<2x256xf32>
    tpu.vector_store %arg5[%c0_3, %c0_4], %3 {strides = array<i32>} : memref<2x256xf32, #tpu.memory_space<vmem>>, vector<2x256xf32>,
    return
  }
  func.func @transform_0(%arg0: i32, %arg1: i32, %arg2: memref<1xi32, #tpu.memory_space<smem>>) -> (i32, i32) {
    %c0_i32 = arith.constant 0 : i32
    return %arg1, %arg0 : i32, i32
  }
  func.func @transform_1(%arg0: i32, %arg1: i32, %arg2: memref<1xi32, #tpu.memory_space<smem>>) -> (i32, i32) {
    %c0_i32 = arith.constant 0 : i32
    %c0_i32_0 = arith.constant 0 : i32
    return %c0_i32, %arg0 : i32, i32
  }
  func.func @transform_2(%arg0: i32, %arg1: i32, %arg2: memref<1xi32, #tpu.memory_space<smem>>) -> (i32, i32) {
    %c0_i32 = arith.constant 0 : i32
    return %arg1, %arg0 : i32, i32
  }
}

</mosaic_0001>

<llo_original>
// kernel: tpu_custom_call.1
$region0: #{tpu_custom_call.1}
  #allocation0 [shape = 'u32[]', space=smem, size = 0x4, offset = 0x4, fixed_abs, tag = 'smem constant byte address 0x4 - core index']
  #allocation1 [shape = 'u32[144,128]{1,0:T(1,128)}', space=vmem, size = 0x12000, scoped, tag = 'internal scratch']
  #allocation2 [shape = 's32[1]{0}', space=sflag, size = 0x4, scoped, tag = 'scoped memory for tpu_custom_call.1']
  #allocation3 [shape = 's32[1]{0:T(128)S(6)}', space=smem, size = 0x200, scoped, tag = 'prefetched SMEM operand 0']
  %s0 = inlined_call_operand.<no memory space> [shape: s32[1], index: 0, kind: input, shape index: {}]
  %s1 = inlined_call_operand.hbm [shape: f32[2,256], index: 1, kind: input, shape index: {}]
  %s2 = inlined_call_operand.vmem [shape: f32[1,256], index: 2, kind: input, shape index: {}]
  %s3 = inlined_call_operand.hbm [shape: f32[2,256], index: 3, kind: output, shape index: {}]
  %s4 = sld [smem:[#allocation0]]
  $region22: #{tpu_custom_call.1} parent=0
    _
  %s6 = ssub.s32 1, %s4
  %s7 = scalar_select 0, %s6, %s4
  %8 = sst [smem:[#allocation3]] %s0
  $region1: #{tpu_custom_call.1} parent=0
    #allocation4 [shape = 'u8[2048]{0}', space=vmem, size = 0x800, scoped, tag = 'input window, operand 1, single buffered']
    #allocation5 [shape = 's32[1]{0}', space=sflag, size = 0x4, scoped, tag = 'scoped memory for tpu_custom_call.1']
    #allocation6 [shape = 's32[1]{0}', space=sflag, size = 0x4, scoped, tag = 'scoped memory for tpu_custom_call.1']
    #allocation7 [shape = 'u8[2048]{0}', space=vmem, size = 0x800, scoped, tag = 'output window, operand 0, single buffered']
    %9 = vsyncpa [#allocation5], 0
    %10 = vsyncpa [#allocation6], 0
    // Predicated region
    $region2: #{tpu_custom_call.1} parent=1 // pred_check
      _
    $region3: #{tpu_custom_call.1} parent=1 // pred_check_branch
      %12 = sbr.rel (0) target = $region5
    $region4: #{tpu_custom_call.1} parent=1 // pred_region
      %s14 = ssub.s32 64, 64
      %15 = vsyncadd [#allocation5], %s14
      %s17 = sshll.u32 [#allocation4], 4
      %s18 = int_to_ptr.vmem [resolvable:$true] %s17
      %20 = dma.hbm_to_vmem [thread:$0]  %s1, 64, %s18, [#allocation5]
    $region5: #{tpu_custom_call.1} parent=1 // pred_fallthru
      _
    // Predicated region
    $region6: #{tpu_custom_call.1} parent=1 // pred_check
      _
    $region7: #{tpu_custom_call.1} parent=1 // pred_check_branch
      %22 = sbr.rel (0) target = $region9
    $region8: #{tpu_custom_call.1} parent=1 // pred_region
      _
    $region9: #{tpu_custom_call.1} parent=1 // pred_fallthru
      _
    // Predicated region
    $region10: #{tpu_custom_call.1} parent=1 // pred_check
      _
    $region11: #{tpu_custom_call.1} parent=1 // pred_check_branch
      %24 = sbr.rel (0) target = $region13
    $region12: #{tpu_custom_call.1} parent=1 // pred_region
      %25 = dma.done [#allocation5], 64
    $region13: #{tpu_custom_call.1} parent=1 // pred_fallthru
      _
    %v26 = vld [vmem:[#allocation4] sm:$0xf]
    %v27 = vld [vmem:[%s2] sm:$0x3]
    %v29 = vlaneseq
    %v30 = vshrl.u32 %v29, 7
    %v31 = vsub.s32 0, %v30
    %v32 = vrot.slane %v27, %v31
    %v33 = vlaneseq
    %v34 = vshrl.u32 %v33, 7
    %v35 = vsub.s32 1, %v34
    %v36 = vrot.slane %v27, %v35
    %v37 = vcombine.low %v32, %v36
    %v39 = vunpack.c.l.s4 1983009808
    %v40 = vunpack.c.0.s8 %v39
    %v41 = vlaneseq
    %v42 = vshrl.u32 %v41, 7
    %v43 = vsub.s32 %v40, %v42
    %v44 = vrot.slane %v37, %v43
    %v46 = vadd.f32 %v26, %v44
    %47 = vst [vmem:[#allocation7] sm:$0xf] %v46
    // Predicated region
    $region14: #{tpu_custom_call.1} parent=1 // pred_check
      _
    $region15: #{tpu_custom_call.1} parent=1 // pred_check_branch
      %49 = sbr.rel (0) target = $region17
    $region16: #{tpu_custom_call.1} parent=1 // pred_region
      %s51 = ssub.s32 64, 64
      %52 = vsyncadd [#allocation6], %s51
      %s54 = sshll.u32 [#allocation7], 4
      %s55 = int_to_ptr.vmem [resolvable:$true] %s54
      %57 = dma.vmem_to_hbm [thread:$0]  %s55, 64, %s3, [#allocation6]
    $region17: #{tpu_custom_call.1} parent=1 // pred_fallthru
      _
    // Predicated region
    $region18: #{tpu_custom_call.1} parent=1 // pred_check
      _
    $region19: #{tpu_custom_call.1} parent=1 // pred_check_branch
      %59 = sbr.rel (0) target = $region21
    $region20: #{tpu_custom_call.1} parent=1 // pred_region
      %60 = dma.done [#allocation6], 64
    $region21: #{tpu_custom_call.1} parent=1 // pred_fallthru
      _
    %61 = vsyncpa [#allocation5], 1
    %62 = vsyncpa [#allocation6], 1

</llo_original>
